<compile_context>
chip_gen: v7x
topology: tpu7x:2x2x1
jax: 0.10.0
libtpu: 0.0.40
codegen_flags: <defaults>
</compile_context>

<pallas_src>
import functools

import jax
import jax.numpy as jnp
from jax.experimental import pallas as pl
from jax.experimental.pallas import tpu as pltpu


def _round_up(x, m):
    return ((x + m - 1) // m) * m


def qnetwork_kernel(s_ref, a_ref, w1s_ref, w1a_ref, b1_ref, w2_ref, b2_ref,
                    w3_ref, b3_ref, o_ref):
    # fc1 (concat fused as two matmuls) + ReLU
    h1 = (jnp.dot(s_ref[...], w1s_ref[...], preferred_element_type=jnp.float32)
          + jnp.dot(a_ref[...], w1a_ref[...], preferred_element_type=jnp.float32)
          + b1_ref[...])
    h1 = jnp.maximum(h1, 0.0)
    # fc2 + ReLU
    h2 = jnp.dot(h1, w2_ref[...], preferred_element_type=jnp.float32) + b2_ref[...]
    h2 = jnp.maximum(h2, 0.0)
    # fc3: VPU mul + lane reduction (avoids a 1/128-occupied MXU result tile)
    o_ref[...] = jnp.sum(h2 * w3_ref[...], axis=-1, keepdims=True) + b3_ref[...]


@functools.partial(jax.jit, static_argnames=("block_b",))
def qnetwork_forward(state, action, prepared_params, block_b=512):
    """state: [B, dim_states], action: [B, dim_actions] -> q: [B, 1].

    `prepared_params` must come from prepare_params() (split + lane-padded).
    """
    w1s, w1a, b1, w2, b2, w3, b3 = prepared_params
    state = state.astype(jnp.float32)
    action = action.astype(jnp.float32)

    B = state.shape[0]
    Ds = state.shape[1]
    Da = action.shape[1]
    Hp = w1s.shape[1]

    # Batch tile: multiple of 8 sublanes, capped (VMEM-safe on v7x's 64 MiB).
    tb = min(block_b, _round_up(B, 8))
    Bp = _round_up(B, tb)
    if Bp != B:
        pad = Bp - B
        state = jnp.pad(state, ((0, pad), (0, 0)))
        action = jnp.pad(action, ((0, pad), (0, 0)))

    grid = (Bp // tb,)

    batch_spec = lambda feat: pl.BlockSpec((tb, feat), lambda i: (i, 0))
    const_spec = lambda shp: pl.BlockSpec(shp, lambda i: (0, 0))

    out = pl.pallas_call(
        qnetwork_kernel,
        out_shape=jax.ShapeDtypeStruct((Bp, 1), jnp.float32),
        grid=grid,
        in_specs=[
            batch_spec(Ds),            # state tile   [tb, Ds]
            batch_spec(Da),            # action tile  [tb, Da]
            const_spec(w1s.shape),     # w1_s         [Ds, Hp]  (VMEM-resident)
            const_spec(w1a.shape),     # w1_a         [Da, Hp]
            const_spec(b1.shape),      # b1           [1, Hp]
            const_spec(w2.shape),      # w2           [Hp, Hp]
            const_spec(b2.shape),      # b2           [1, Hp]
            const_spec(w3.shape),      # w3 (row)     [1, Hp]
            const_spec(b3.shape),      # b3           [1, 1]
        ],
        out_specs=batch_spec(1),       # q tile       [tb, 1]
        compiler_params=pltpu.CompilerParams(
            dimension_semantics=("parallel",)),
    )(state, action, w1s, w1a, b1, w2, b2, w3, b3)

    return out[:B] if Bp != B else out


def init_params(key, dim_states, dim_actions, hidden_dim):
    """Deterministic init mimicking nn.Linear's U(-1/sqrt(fan_in), ...).
    Weights stored [in, out] (transposed vs. PyTorch)."""
    d_in = dim_states + dim_actions
    ks = jax.random.split(key, 6)

    def lin(kw, kb, fan_in, fan_out):
        bound = 1.0 / jnp.sqrt(jnp.float32(fan_in))
        w = jax.random.uniform(kw, (fan_in, fan_out), jnp.float32, -bound, bound)
        b = jax.random.uniform(kb, (fan_out,), jnp.float32, -bound, bound)
        return w, b

    w1, b1 = lin(ks[0], ks[1], d_in, hidden_dim)
    w2, b2 = lin(ks[2], ks[3], hidden_dim, hidden_dim)
    w3, b3 = lin(ks[4], ks[5], hidden_dim, 1)
    return (w1, b1, w2, b2, w3, b3)


def prepare_params(params, dim_states):
    """One-time (outside the hot path) split of w1 and zero-padding of the
    hidden dim up to a multiple of 128 lanes. Padded bias lanes and padded
    weight rows/cols are zero, so padded hidden lanes stay exactly 0."""
    w1, b1, w2, b2, w3, b3 = params
    H = w1.shape[1]
    Hp = _round_up(H, 128)
    ph = Hp - H

    w1s = jnp.pad(w1[:dim_states], ((0, 0), (0, ph)))
    w1a = jnp.pad(w1[dim_states:], ((0, 0), (0, ph)))
    b1p = jnp.pad(b1.reshape(1, -1), ((0, 0), (0, ph)))
    w2p = jnp.pad(w2, ((0, ph), (0, ph)))
    b2p = jnp.pad(b2.reshape(1, -1), ((0, 0), (0, ph)))
    w3r = jnp.pad(w3.reshape(1, -1), ((0, 0), (0, ph)))   # [H,1] -> [1,Hp]
    b3p = b3.reshape(1, 1)
    return (w1s, w1a, b1p, w2p, b2p, w3r, b3p)


def reference_forward(state, action, params):
    w1, b1, w2, b2, w3, b3 = params
    x = jnp.concatenate([state, action], axis=1)
    x = jnp.maximum(x @ w1 + b1, 0.0)
    x = jnp.maximum(x @ w2 + b2, 0.0)
    return x @ w3 + b3


if __name__ == "__main__":
    # Small shapes consistent with the module.
    batch, dim_states, dim_actions, hidden_dim = 8, 12, 4, 32

    key = jax.random.PRNGKey(0)
    k_p, k_s, k_a = jax.random.split(key, 3)

    params = init_params(k_p, dim_states, dim_actions, hidden_dim)
    prepared = prepare_params(params, dim_states)

    state = jax.random.normal(k_s, (batch, dim_states), jnp.float32)
    action = jax.random.normal(k_a, (batch, dim_actions), jnp.float32)

    q = qnetwork_forward(state, action, prepared)
    jax.block_until_ready(q)

    q_ref = reference_forward(state, action, params)
    assert q.shape == (batch, 1)
    assert jnp.allclose(q, q_ref, atol=1e-5, rtol=1e-5)

    print("KERNEL_OK")
</pallas_src>

<mosaic_0001>
module attributes {stable_mosaic.version = 11 : i64} {
  func.func @qnetwork_kernel(%arg0: i32, %arg1: memref<8x12xf32, #tpu.memory_space<vmem>>, %arg2: memref<8x4xf32, #tpu.memory_space<vmem>>, %arg3: memref<12x128xf32, #tpu.memory_space<vmem>>, %arg4: memref<4x128xf32, #tpu.memory_space<vmem>>, %arg5: memref<1x128xf32, #tpu.memory_space<vmem>>, %arg6: memref<128x128xf32, #tpu.memory_space<vmem>>, %arg7: memref<1x128xf32, #tpu.memory_space<vmem>>, %arg8: memref<1x128xf32, #tpu.memory_space<vmem>>, %arg9: memref<1x1xf32, #tpu.memory_space<vmem>>, %arg10: memref<8x1xf32, #tpu.memory_space<vmem>>) attributes {dimension_semantics = [#tpu.dimension_semantics<parallel>], iteration_bounds = array<i64: 1>, scalar_prefetch = 0 : i64, scratch_operands = 0 : i64, tpu.core_type = #tpu.core_type<tc>, window_params = [{transform_indices = @transform_0, window_bounds = array<i64: 8, 12>}, {transform_indices = @transform_1, window_bounds = array<i64: 8, 4>}, {pipeline_mode = #tpu.pipeline_mode<synchronous>, transform_indices = @transform_2, window_bounds = array<i64: 12, 128>}, {pipeline_mode = #tpu.pipeline_mode<synchronous>, transform_indices = @transform_3, window_bounds = array<i64: 4, 128>}, {pipeline_mode = #tpu.pipeline_mode<synchronous>, transform_indices = @transform_4, window_bounds = array<i64: 1, 128>}, {pipeline_mode = #tpu.pipeline_mode<synchronous>, transform_indices = @transform_5, window_bounds = array<i64: 128, 128>}, {pipeline_mode = #tpu.pipeline_mode<synchronous>, transform_indices = @transform_6, window_bounds = array<i64: 1, 128>}, {pipeline_mode = #tpu.pipeline_mode<synchronous>, transform_indices = @transform_7, window_bounds = array<i64: 1, 128>}, {pipeline_mode = #tpu.pipeline_mode<synchronous>, transform_indices = @transform_8, window_bounds = array<i64: 1, 1>}, {transform_indices = @transform_9, window_bounds = array<i64: 8, 1>}]} {
    %c0 = arith.constant 0 : index
    %c0_0 = arith.constant 0 : index
    %0 = vector.load %arg1[%c0, %c0_0] : memref<8x12xf32, #tpu.memory_space<vmem>>, vector<8x12xf32>
    %c0_1 = arith.constant 0 : index
    %c0_2 = arith.constant 0 : index
    %1 = vector.load %arg3[%c0_1, %c0_2] : memref<12x128xf32, #tpu.memory_space<vmem>>, vector<12x128xf32>
    %cst = arith.constant dense<0.000000e+00> : vector<8x128xf32>
    %2 = tpu.matmul %0, %1, %cst {dimension_numbers = #tpu.dot_dimension_numbers<[1], [0], [0], [1], [0, 0, 1, 1], [], []>} : vector<8x12xf32>, vector<12x128xf32>, vector<8x128xf32> -> vector<8x128xf32>
    %c0_3 = arith.constant 0 : index
    %c0_4 = arith.constant 0 : index
    %3 = vector.load %arg2[%c0_3, %c0_4] : memref<8x4xf32, #tpu.memory_space<vmem>>, vector<8x4xf32>
    %c0_5 = arith.constant 0 : index
    %c0_6 = arith.constant 0 : index
    %4 = vector.load %arg4[%c0_5, %c0_6] : memref<4x128xf32, #tpu.memory_space<vmem>>, vector<4x128xf32>
    %cst_7 = arith.constant dense<0.000000e+00> : vector<8x128xf32>
    %5 = tpu.matmul %3, %4, %cst_7 {dimension_numbers = #tpu.dot_dimension_numbers<[1], [0], [0], [1], [0, 0, 1, 1], [], []>} : vector<8x4xf32>, vector<4x128xf32>, vector<8x128xf32> -> vector<8x128xf32>
    %6 = arith.addf %2, %5 : vector<8x128xf32>
    %c0_8 = arith.constant 0 : index
    %c0_9 = arith.constant 0 : index
    %7 = vector.load %arg5[%c0_8, %c0_9] : memref<1x128xf32, #tpu.memory_space<vmem>>, vector<1x128xf32>
    %8 = vector.broadcast %7 : vector<1x128xf32> to vector<8x128xf32>
    %9 = arith.addf %6, %8 : vector<8x128xf32>
    %cst_10 = arith.constant 0.000000e+00 : f32
    %10 = vector.broadcast %cst_10 : f32 to vector<8x128xf32>
    %11 = arith.maximumf %9, %10 : vector<8x128xf32>
    %c0_11 = arith.constant 0 : index
    %c0_12 = arith.constant 0 : index
    %12 = vector.load %arg6[%c0_11, %c0_12] : memref<128x128xf32, #tpu.memory_space<vmem>>, vector<128x128xf32>
    %cst_13 = arith.constant dense<0.000000e+00> : vector<8x128xf32>
    %13 = tpu.matmul %11, %12, %cst_13 {dimension_numbers = #tpu.dot_dimension_numbers<[1], [0], [0], [1], [0, 0, 1, 1], [], []>} : vector<8x128xf32>, vector<128x128xf32>, vector<8x128xf32> -> vector<8x128xf32>
    %c0_14 = arith.constant 0 : index
    %c0_15 = arith.constant 0 : index
    %14 = vector.load %arg7[%c0_14, %c0_15] : memref<1x128xf32, #tpu.memory_space<vmem>>, vector<1x128xf32>
    %15 = vector.broadcast %14 : vector<1x128xf32> to vector<8x128xf32>
    %16 = arith.addf %13, %15 : vector<8x128xf32>
    %cst_16 = arith.constant 0.000000e+00 : f32
    %17 = vector.broadcast %cst_16 : f32 to vector<8x128xf32>
    %18 = arith.maximumf %16, %17 : vector<8x128xf32>
    %c0_17 = arith.constant 0 : index
    %c0_18 = arith.constant 0 : index
    %19 = vector.load %arg8[%c0_17, %c0_18] : memref<1x128xf32, #tpu.memory_space<vmem>>, vector<1x128xf32>
    %20 = vector.broadcast %19 : vector<1x128xf32> to vector<8x128xf32>
    %21 = arith.mulf %18, %20 : vector<8x128xf32>
    %cst_19 = arith.constant dense<0.000000e+00> : vector<8xf32>
    %22 = vector.multi_reduction <add>, %21, %cst_19 [1] : vector<8x128xf32> to vector<8xf32>
    %23 = vector.shape_cast %22 : vector<8xf32> to vector<8x1xf32>
    %c0_20 = arith.constant 0 : index
    %c0_21 = arith.constant 0 : index
    %24 = vector.load %arg9[%c0_20, %c0_21] : memref<1x1xf32, #tpu.memory_space<vmem>>, vector<1x1xf32>
    %25 = vector.broadcast %24 : vector<1x1xf32> to vector<8x1xf32>
    %26 = arith.addf %23, %25 : vector<8x1xf32>
    %c0_22 = arith.constant 0 : index
    %c0_23 = arith.constant 0 : index
    %27 = vector.load %arg10[%c0_22, %c0_23] : memref<8x1xf32, #tpu.memory_space<vmem>>, vector<8x1xf32>
    tpu.vector_store %arg10[%c0_22, %c0_23], %26 {strides = array<i32>} : memref<8x1xf32, #tpu.memory_space<vmem>>, vector<8x1xf32>,
    return
  }
  func.func @transform_0(%arg0: i32) -> (i32, i32) {
    %c0_i32 = arith.constant 0 : i32
    %c0_i32_0 = arith.constant 0 : i32
    return %arg0, %c0_i32 : i32, i32
  }
  func.func @transform_1(%arg0: i32) -> (i32, i32) {
    %c0_i32 = arith.constant 0 : i32
    %c0_i32_0 = arith.constant 0 : i32
    return %arg0, %c0_i32 : i32, i32
  }
  func.func @transform_2(%arg0: i32) -> (i32, i32) {
    %c0_i32 = arith.constant 0 : i32
    %c0_i32_0 = arith.constant 0 : i32
    %c0_i32_1 = arith.constant 0 : i32
    return %c0_i32, %c0_i32_0 : i32, i32
  }
  func.func @transform_3(%arg0: i32) -> (i32, i32) {
    %c0_i32 = arith.constant 0 : i32
    %c0_i32_0 = arith.constant 0 : i32
    %c0_i32_1 = arith.constant 0 : i32
    return %c0_i32, %c0_i32_0 : i32, i32
  }
  func.func @transform_4(%arg0: i32) -> (i32, i32) {
    %c0_i32 = arith.constant 0 : i32
    %c0_i32_0 = arith.constant 0 : i32
    %c0_i32_1 = arith.constant 0 : i32
    return %c0_i32, %c0_i32_0 : i32, i32
  }
  func.func @transform_5(%arg0: i32) -> (i32, i32) {
    %c0_i32 = arith.constant 0 : i32
    %c0_i32_0 = arith.constant 0 : i32
    %c0_i32_1 = arith.constant 0 : i32
    return %c0_i32, %c0_i32_0 : i32, i32
  }
  func.func @transform_6(%arg0: i32) -> (i32, i32) {
    %c0_i32 = arith.constant 0 : i32
    %c0_i32_0 = arith.constant 0 : i32
    %c0_i32_1 = arith.constant 0 : i32
    return %c0_i32, %c0_i32_0 : i32, i32
  }
  func.func @transform_7(%arg0: i32) -> (i32, i32) {
    %c0_i32 = arith.constant 0 : i32
    %c0_i32_0 = arith.constant 0 : i32
    %c0_i32_1 = arith.constant 0 : i32
    return %c0_i32, %c0_i32_0 : i32, i32
  }
  func.func @transform_8(%arg0: i32) -> (i32, i32) {
    %c0_i32 = arith.constant 0 : i32
    %c0_i32_0 = arith.constant 0 : i32
    %c0_i32_1 = arith.constant 0 : i32
    return %c0_i32, %c0_i32_0 : i32, i32
  }
  func.func @transform_9(%arg0: i32) -> (i32, i32) {
    %c0_i32 = arith.constant 0 : i32
    %c0_i32_0 = arith.constant 0 : i32
    return %arg0, %c0_i32 : i32, i32
  }
}

</mosaic_0001>

<llo_original>
// kernel: qnetwork_forward.1
$region0: #{qnetwork_forward.1}
  #allocation0 [shape = 'u32[]', space=smem, size = 0x4, offset = 0x4, fixed_abs, tag = 'smem constant byte address 0x4 - core index']
  #allocation1 [shape = 'u32[144,128]{1,0:T(1,128)}', space=vmem, size = 0x12000, scoped, tag = 'internal scratch']
  #allocation2 [shape = 'f32[1,1]{1,0:T(1,128)S(1)}', space=vmem, size = 0x200, scoped, tag = 'scoped memory for qnetwork_forward.1']
  %s0 = inlined_call_operand.hbm [shape: f32[8,12], index: 0, kind: input, shape index: {}]
  %s1 = inlined_call_operand.vmem [shape: f32[8,4], index: 1, kind: input, shape index: {}]
  %s2 = inlined_call_operand.vmem [shape: f32[12,128], index: 2, kind: input, shape index: {}]
  %s3 = inlined_call_operand.vmem [shape: f32[4,128], index: 3, kind: input, shape index: {}]
  %s4 = inlined_call_operand.vmem [shape: f32[1,128], index: 4, kind: input, shape index: {}]
  %s5 = inlined_call_operand.hbm [shape: f32[128,128], index: 5, kind: input, shape index: {}]
  %s6 = inlined_call_operand.vmem [shape: f32[1,128], index: 6, kind: input, shape index: {}]
  %s7 = inlined_call_operand.vmem [shape: f32[1,128], index: 7, kind: input, shape index: {}]
  %s8 = inlined_call_operand.<no memory space> [shape: f32[1,1], index: 8, kind: input, shape index: {}]
  %s9 = inlined_call_operand.vmem [shape: f32[8,1], index: 9, kind: output, shape index: {}]
  %s10 = sld [smem:[#allocation0]]
  $region54: #{qnetwork_forward.1} parent=0
    _
  %s12 = ssub.s32 1, %s10
  %s13 = scalar_select 0, %s12, %s10
  %v14 = vstv %s8
  %15 = vst [vmem:[#allocation2] sm:$0x1] %v14
  $region1: #{qnetwork_forward.1} parent=0
    #allocation3 [shape = 'u8[4096]{0}', space=vmem, size = 0x1000, scoped, tag = 'input window, operand 0, single buffered']
    #allocation4 [shape = 's32[1]{0}', space=sflag, size = 0x4, scoped, tag = 'scoped memory for qnetwork_forward.1']
    #allocation5 [shape = 'u8[65536]{0}', space=vmem, size = 0x10000, scoped, tag = 'input window, operand 5, single buffered']
    #allocation6 [shape = 's32[1]{0}', space=sflag, size = 0x4, scoped, tag = 'scoped memory for qnetwork_forward.1']
    %16 = vsyncpa [#allocation4], 0
    %17 = vsyncpa [#allocation6], 0
    // Predicated region
    $region2: #{qnetwork_forward.1} parent=1 // pred_check
      _
    $region3: #{qnetwork_forward.1} parent=1 // pred_check_branch
      %19 = sbr.rel (0) target = $region5
    $region4: #{qnetwork_forward.1} parent=1 // pred_region
      %s21 = ssub.s32 128, 128
      %22 = vsyncadd [#allocation4], %s21
      %s24 = sshll.u32 [#allocation3], 4
      %s25 = int_to_ptr.vmem [resolvable:$true] %s24
      %27 = dma.hbm_to_vmem [thread:$0]  %s0, 128, %s25, [#allocation4]
    $region5: #{qnetwork_forward.1} parent=1 // pred_fallthru
      _
    // Predicated region
    $region6: #{qnetwork_forward.1} parent=1 // pred_check
      _
    $region7: #{qnetwork_forward.1} parent=1 // pred_check_branch
      %29 = sbr.rel (0) target = $region9
    $region8: #{qnetwork_forward.1} parent=1 // pred_region
      _
    $region9: #{qnetwork_forward.1} parent=1 // pred_fallthru
      _
    // Predicated region
    $region10: #{qnetwork_forward.1} parent=1 // pred_check
      _
    $region11: #{qnetwork_forward.1} parent=1 // pred_check_branch
      %31 = sbr.rel (0) target = $region13
    $region12: #{qnetwork_forward.1} parent=1 // pred_region
      _
    $region13: #{qnetwork_forward.1} parent=1 // pred_fallthru
      _
    // Predicated region
    $region14: #{qnetwork_forward.1} parent=1 // pred_check
      _
    $region15: #{qnetwork_forward.1} parent=1 // pred_check_branch
      %33 = sbr.rel (0) target = $region17
    $region16: #{qnetwork_forward.1} parent=1 // pred_region
      _
    $region17: #{qnetwork_forward.1} parent=1 // pred_fallthru
      _
    // Predicated region
    $region18: #{qnetwork_forward.1} parent=1 // pred_check
      _
    $region19: #{qnetwork_forward.1} parent=1 // pred_check_branch
      %35 = sbr.rel (0) target = $region21
    $region20: #{qnetwork_forward.1} parent=1 // pred_region
      _
    $region21: #{qnetwork_forward.1} parent=1 // pred_fallthru
      _
    // Predicated region
    $region22: #{qnetwork_forward.1} parent=1 // pred_check
      _
    $region23: #{qnetwork_forward.1} parent=1 // pred_check_branch
      %37 = sbr.rel (0) target = $region25
    $region24: #{qnetwork_forward.1} parent=1 // pred_region
      %s39 = ssub.s32 2048, 2048
      %40 = vsyncadd [#allocation6], %s39
      %s41 = sshll.u32 [#allocation5], 4
      %s42 = int_to_ptr.vmem [resolvable:$true] %s41
      %47 = dma.hbm_to_vmem [thread:$0]  %s5, 2048, %s42, [#allocation6], 128, 128, 8
    $region25: #{qnetwork_forward.1} parent=1 // pred_fallthru
      _
    // Predicated region
    $region26: #{qnetwork_forward.1} parent=1 // pred_check
      _
    $region27: #{qnetwork_forward.1} parent=1 // pred_check_branch
      %49 = sbr.rel (0) target = $region29
    $region28: #{qnetwork_forward.1} parent=1 // pred_region
      _
    $region29: #{qnetwork_forward.1} parent=1 // pred_fallthru
      _
    // Predicated region
    $region30: #{qnetwork_forward.1} parent=1 // pred_check
      _
    $region31: #{qnetwork_forward.1} parent=1 // pred_check_branch
      %51 = sbr.rel (0) target = $region33
    $region32: #{qnetwork_forward.1} parent=1 // pred_region
      _
    $region33: #{qnetwork_forward.1} parent=1 // pred_fallthru
      _
    // Predicated region
    $region34: #{qnetwork_forward.1} parent=1 // pred_check
      _
    $region35: #{qnetwork_forward.1} parent=1 // pred_check_branch
      %53 = sbr.rel (0) target = $region37
    $region36: #{qnetwork_forward.1} parent=1 // pred_region
      _
    $region37: #{qnetwork_forward.1} parent=1 // pred_fallthru
      _
    // Predicated region
    $region38: #{qnetwork_forward.1} parent=1 // pred_check
      _
    $region39: #{qnetwork_forward.1} parent=1 // pred_check_branch
      %55 = sbr.rel (0) target = $region41
    $region40: #{qnetwork_forward.1} parent=1 // pred_region
      %56 = dma.done [#allocation4], 128
    $region41: #{qnetwork_forward.1} parent=1 // pred_fallthru
      _
    // Predicated region
    $region42: #{qnetwork_forward.1} parent=1 // pred_check
      _
    $region43: #{qnetwork_forward.1} parent=1 // pred_check_branch
      %58 = sbr.rel (0) target = $region45
    $region44: #{qnetwork_forward.1} parent=1 // pred_region
      %59 = dma.done [#allocation6], 2048
    $region45: #{qnetwork_forward.1} parent=1 // pred_fallthru
      _
    %v60 = vld [vmem:[#allocation3] sm:$0xff]
    %v61 = vld [vmem:[%s2] sm:$0xff]
    %v62 = vld [vmem:[%s2 + $0x8] sm:$0xf]
    %v63 = vld [vmem:[%s1] sm:$0xff]
    %v64 = vld [vmem:[%s3] sm:$0xf]
    %vm65 = vcmask 31744
    %v67 = vsel %vm65, %v63, 0
    %vm69 = vcmask 1043456
    %v71 = vsel %vm69, %v64, 0
    %73 = vmatprep.subr.mxu0 0.0
    %74 = vmatpush1.msra.mxu0 %v71
    %75 = vmatprep.subr.mxu0 0.0
    %76 = vmatpush1.msra.mxu0 0.0
    %77 = vmatprep.subr.mxu0 0.0
    %78 = vmatpush1.msra.mxu0 0.0
    %79 = vmatprep.subr.mxu0 0.0
    %80 = vmatpush1.msra.mxu0 0.0
    %81 = vmatprep.subr.mxu0 0.0
    %82 = vmatpush1.msra.mxu0 0.0
    %83 = vmatprep.subr.mxu0 0.0
    %84 = vmatpush1.msra.mxu0 0.0
    %85 = vmatprep.subr.mxu0 0.0
    %86 = vmatpush1.msra.mxu0 0.0
    %87 = vmatprep.subr.mxu0 0.0
    %88 = vmatpush1.msra.mxu0 0.0
    %89 = vmatprep.subr.mxu0 0.0
    %90 = vmatpush1.msra.mxu0 0.0
    %91 = vmatprep.subr.mxu0 0.0
    %92 = vmatpush1.msra.mxu0 0.0
    %93 = vmatprep.subr.mxu0 0.0
    %94 = vmatpush1.msra.mxu0 0.0
    %95 = vmatprep.subr.mxu0 0.0
    %96 = vmatpush1.msra.mxu0 0.0
    %97 = vmatprep.subr.mxu0 0.0
    %98 = vmatpush1.msra.mxu0 0.0
    %99 = vmatprep.subr.mxu0 0.0
    %100 = vmatpush1.msra.mxu0 0.0
    %101 = vmatprep.subr.mxu0 0.0
    %102 = vmatpush1.msra.mxu0 0.0
    %103 = vmatprep.subr.mxu0 0.0
    %104 = vmatpush1.msra.mxu0 0.0
    %105 = vmatprep.subr.mxu0 0.0
    %106 = vmatpush1.msra.mxu0 0.0
    %107 = vmatprep.subr.mxu0 0.0
    %108 = vmatpush1.msra.mxu0 0.0
    %109 = vmatprep.subr.mxu0 0.0
    %110 = vmatpush1.msra.mxu0 0.0
    %111 = vmatprep.subr.mxu0 0.0
    %112 = vmatpush1.msra.mxu0 0.0
    %113 = vmatprep.subr.mxu0 0.0
    %114 = vmatpush1.msra.mxu0 0.0
    %115 = vmatprep.subr.mxu0 0.0
    %116 = vmatpush1.msra.mxu0 0.0
    %117 = vmatprep.subr.mxu0 0.0
    %118 = vmatpush1.msra.mxu0 0.0
    %119 = vmatprep.subr.mxu0 0.0
    %120 = vmatpush1.msra.mxu0 0.0
    %121 = vmatprep.subr.mxu0 0.0
    %122 = vmatpush1.msra.mxu0 0.0
    %123 = vmatprep.subr.mxu0 0.0
    %124 = vmatpush1.msra.mxu0 0.0
    %125 = vmatprep.subr.mxu0 0.0
    %126 = vmatpush1.msra.mxu0 0.0
    %127 = vmatprep.subr.mxu0 0.0
    %128 = vmatpush1.msra.mxu0 0.0
    %129 = vmatprep.subr.mxu0 0.0
    %130 = vmatpush1.msra.mxu0 0.0
    %131 = vmatprep.subr.mxu0 0.0
    %132 = vmatpush1.msra.mxu0 0.0
    %133 = vmatprep.subr.mxu0 0.0
    %134 = vmatpush1.msra.mxu0 0.0
    %135 = vmatprep.subr.mxu0 0.0
    %136 = vmatpush1.msra.mxu0 0.0
    %137 = vmatprep.mubr.f32.mxu0 0.0
    %138 = vmatmul.mubr.f32.gmra.mrb[0].mxu0 %v67
    %v139 = vpop.f32.mrb[0].mxu0
    %v140 = vadd.f32 0.0, %v139
    %v141 = vpop.f32.mrb[0].mxu0
    %142 = vdwg.mxu0
    %vm143 = vcmask 97280
    %v145 = vsel %vm143, %v60, 0
    %v148 = vsel %vm69, %v62, 0
    %150 = vmatprep.subr.mxu0 0.0
    %151 = vmatpush1.msra.mxu0 %v61
    %152 = vmatprep.subr.mxu0 0.0
    %153 = vmatpush1.msra.mxu0 %v148
    %154 = vmatprep.subr.mxu0 0.0
    %155 = vmatpush1.msra.mxu0 0.0
    %156 = vmatprep.subr.mxu0 0.0
    %157 = vmatpush1.msra.mxu0 0.0
    %158 = vmatprep.subr.mxu0 0.0
    %159 = vmatpush1.msra.mxu0 0.0
    %160 = vmatprep.subr.mxu0 0.0
    %161 = vmatpush1.msra.mxu0 0.0
    %162 = vmatprep.subr.mxu0 0.0
    %163 = vmatpush1.msra.mxu0 0.0
    %164 = vmatprep.subr.mxu0 0.0
    %165 = vmatpush1.msra.mxu0 0.0
    %166 = vmatprep.subr.mxu0 0.0
    %167 = vmatpush1.msra.mxu0 0.0
    %168 = vmatprep.subr.mxu0 0.0
    %169 = vmatpush1.msra.mxu0 0.0
    %170 = vmatprep.subr.mxu0 0.0
    %171 = vmatpush1.msra.mxu0 0.0
    %172 = vmatprep.subr.mxu0 0.0
    %173 = vmatpush1.msra.mxu0 0.0
    %174 = vmatprep.subr.mxu0 0.0
    %175 = vmatpush1.msra.mxu0 0.0
    %176 = vmatprep.subr.mxu0 0.0
    %177 = vmatpush1.msra.mxu0 0.0
    %178 = vmatprep.subr.mxu0 0.0
    %179 = vmatpush1.msra.mxu0 0.0
    %180 = vmatprep.subr.mxu0 0.0
    %181 = vmatpush1.msra.mxu0 0.0
    %182 = vmatprep.subr.mxu0 0.0
    %183 = vmatpush1.msra.mxu0 0.0
    %184 = vmatprep.subr.mxu0 0.0
    %185 = vmatpush1.msra.mxu0 0.0
    %186 = vmatprep.subr.mxu0 0.0
    %187 = vmatpush1.msra.mxu0 0.0
    %188 = vmatprep.subr.mxu0 0.0
    %189 = vmatpush1.msra.mxu0 0.0
    %190 = vmatprep.subr.mxu0 0.0
    %191 = vmatpush1.msra.mxu0 0.0
    %192 = vmatprep.subr.mxu0 0.0
    %193 = vmatpush1.msra.mxu0 0.0
    %194 = vmatprep.subr.mxu0 0.0
    %195 = vmatpush1.msra.mxu0 0.0
    %196 = vmatprep.subr.mxu0 0.0
    %197 = vmatpush1.msra.mxu0 0.0
    %198 = vmatprep.subr.mxu0 0.0
    %199 = vmatpush1.msra.mxu0 0.0
    %200 = vmatprep.subr.mxu0 0.0
    %201 = vmatpush1.msra.mxu0 0.0
    %202 = vmatprep.subr.mxu0 0.0
    %203 = vmatpush1.msra.mxu0 0.0
    %204 = vmatprep.subr.mxu0 0.0
    %205 = vmatpush1.msra.mxu0 0.0
    %206 = vmatprep.subr.mxu0 0.0
    %207 = vmatpush1.msra.mxu0 0.0
    %208 = vmatprep.subr.mxu0 0.0
    %209 = vmatpush1.msra.mxu0 0.0
    %210 = vmatprep.subr.mxu0 0.0
    %211 = vmatpush1.msra.mxu0 0.0
    %212 = vmatprep.subr.mxu0 0.0
    %213 = vmatpush1.msra.mxu0 0.0
    %214 = vmatprep.mubr.f32.mxu0 0.0
    %215 = vmatmul.mubr.f32.gmra.mrb[0].mxu0 %v145
    %v216 = vpop.f32.mrb[0].mxu0
    %v217 = vadd.f32 %v140, %v216
    %v218 = vpop.f32.mrb[0].mxu0
    %219 = vdwg.mxu0
    %v220 = vld [vmem:[%s4] sm:$0x1]
    %v222 = vlaneseq
    %v223 = vshrl.u32 %v222, 7
    %v224 = vsub.s32 0, %v223
    %v225 = vrot.slane %v220, %v224
    %v227 = vadd.f32 %v217, %v225
    %v228 = vmax.f32 %v227, 0.0
    %v229 = vld [vmem:[#allocation5] sm:$0xff]
    %v230 = vld [vmem:[#allocation5 + $0x8] sm:$0xff]
    %v231 = vld [vmem:[#allocation5 + $0x10] sm:$0xff]
    %v232 = vld [vmem:[#allocation5 + $0x18] sm:$0xff]
    %v233 = vld [vmem:[#allocation5 + $0x20] sm:$0xff]
    %v234 = vld [vmem:[#allocation5 + $0x28] sm:$0xff]
    %v235 = vld [vmem:[#allocation5 + $0x30] sm:$0xff]
    %v236 = vld [vmem:[#allocation5 + $0x38] sm:$0xff]
    %v237 = vld [vmem:[#allocation5 + $0x40] sm:$0xff]
    %v238 = vld [vmem:[#allocation5 + $0x48] sm:$0xff]
    %v239 = vld [vmem:[#allocation5 + $0x50] sm:$0xff]
    %v240 = vld [vmem:[#allocation5 + $0x58] sm:$0xff]
    %v241 = vld [vmem:[#allocation5 + $0x60] sm:$0xff]
    %v242 = vld [vmem:[#allocation5 + $0x68] sm:$0xff]
    %v243 = vld [vmem:[#allocation5 + $0x70] sm:$0xff]
    %v244 = vld [vmem:[#allocation5 + $0x78] sm:$0xff]
    %v245 = vld [vmem:[%s6] sm:$0x1]
    %v247 = vlaneseq
    %v248 = vshrl.u32 %v247, 7
    %v249 = vsub.s32 0, %v248
    %v250 = vrot.slane %v245, %v249
    %252 = vmatprep.subr.mxu0 0.0
    %253 = vmatpush1.msra.mxu0 %v229
    %254 = vmatprep.subr.mxu0 0.0
    %255 = vmatpush1.msra.mxu0 %v230
    %256 = vmatprep.subr.mxu0 0.0
    %257 = vmatpush1.msra.mxu0 %v231
    %258 = vmatprep.subr.mxu0 0.0
    %259 = vmatpush1.msra.mxu0 %v232
    %260 = vmatprep.subr.mxu0 0.0
    %261 = vmatpush1.msra.mxu0 %v233
    %262 = vmatprep.subr.mxu0 0.0
    %263 = vmatpush1.msra.mxu0 %v234
    %264 = vmatprep.subr.mxu0 0.0
    %265 = vmatpush1.msra.mxu0 %v235
    %266 = vmatprep.subr.mxu0 0.0
    %267 = vmatpush1.msra.mxu0 %v236
    %268 = vmatprep.subr.mxu0 0.0
    %269 = vmatpush1.msra.mxu0 %v237
    %270 = vmatprep.subr.mxu0 0.0
    %271 = vmatpush1.msra.mxu0 %v238
    %272 = vmatprep.subr.mxu0 0.0
    %273 = vmatpush1.msra.mxu0 %v239
    %274 = vmatprep.subr.mxu0 0.0
    %275 = vmatpush1.msra.mxu0 %v240
    %276 = vmatprep.subr.mxu0 0.0
    %277 = vmatpush1.msra.mxu0 %v241
    %278 = vmatprep.subr.mxu0 0.0
    %279 = vmatpush1.msra.mxu0 %v242
    %280 = vmatprep.subr.mxu0 0.0
    %281 = vmatpush1.msra.mxu0 %v243
    %282 = vmatprep.subr.mxu0 0.0
    %283 = vmatpush1.msra.mxu0 %v244
    %284 = vmatprep.subr.mxu0 0.0
    %285 = vmatpush1.msra.mxu0 0.0
    %286 = vmatprep.subr.mxu0 0.0
    %287 = vmatpush1.msra.mxu0 0.0
    %288 = vmatprep.subr.mxu0 0.0
    %289 = vmatpush1.msra.mxu0 0.0
    %290 = vmatprep.subr.mxu0 0.0
    %291 = vmatpush1.msra.mxu0 0.0
    %292 = vmatprep.subr.mxu0 0.0
    %293 = vmatpush1.msra.mxu0 0.0
    %294 = vmatprep.subr.mxu0 0.0
    %295 = vmatpush1.msra.mxu0 0.0
    %296 = vmatprep.subr.mxu0 0.0
    %297 = vmatpush1.msra.mxu0 0.0
    %298 = vmatprep.subr.mxu0 0.0
    %299 = vmatpush1.msra.mxu0 0.0
    %300 = vmatprep.subr.mxu0 0.0
    %301 = vmatpush1.msra.mxu0 0.0
    %302 = vmatprep.subr.mxu0 0.0
    %303 = vmatpush1.msra.mxu0 0.0
    %304 = vmatprep.subr.mxu0 0.0
    %305 = vmatpush1.msra.mxu0 0.0
    %306 = vmatprep.subr.mxu0 0.0
    %307 = vmatpush1.msra.mxu0 0.0
    %308 = vmatprep.subr.mxu0 0.0
    %309 = vmatpush1.msra.mxu0 0.0
    %310 = vmatprep.subr.mxu0 0.0
    %311 = vmatpush1.msra.mxu0 0.0
    %312 = vmatprep.subr.mxu0 0.0
    %313 = vmatpush1.msra.mxu0 0.0
    %314 = vmatprep.subr.mxu0 0.0
    %315 = vmatpush1.msra.mxu0 0.0
    %316 = vmatprep.mubr.f32.mxu0 0.0
    %317 = vmatmul.mubr.f32.gmra.mrb[0].mxu0 %v228
    %v318 = vpop.f32.mrb[0].mxu0
    %v319 = vadd.f32 %v250, %v318
    %v320 = vpop.f32.mrb[0].mxu0
    %321 = vdwg.mxu0
    %v322 = vmax.f32 %v319, 0.0
    %v323 = vld [vmem:[%s7] sm:$0x1]
    %v325 = vlaneseq
    %v326 = vshrl.u32 %v325, 7
    %v327 = vsub.s32 0, %v326
    %v328 = vrot.slane %v323, %v327
    %v330 = vmul.f32 %v322, %v328
    %331 = vadd.xlane.f32.xlu0 %v330
    %v332 = vpop.xlane.xlu0 %331
    %v333 = vld [vmem:[#allocation2] sm:$0x1]
    %v335 = vlaneseq
    %v336 = vshrl.u32 %v335, 7
    %v337 = vsub.s32 0, %v336
    %v338 = vrot.slane %v333, %v337
    %v340 = vadd.f32 %v332, %v338
    %vm341 = vcmask 7168
    %342 = vst.msk [vmem:[%s9] sm:$0xff] %vm341, %v340
    // Predicated region
    $region46: #{qnetwork_forward.1} parent=1 // pred_check
      _
    $region47: #{qnetwork_forward.1} parent=1 // pred_check_branch
      %344 = sbr.rel (0) target = $region49
    $region48: #{qnetwork_forward.1} parent=1 // pred_region
      _
    $region49: #{qnetwork_forward.1} parent=1 // pred_fallthru
      _
    // Predicated region
    $region50: #{qnetwork_forward.1} parent=1 // pred_check
      _
    $region51: #{qnetwork_forward.1} parent=1 // pred_check_branch
      %346 = sbr.rel (0) target = $region53
    $region52: #{qnetwork_forward.1} parent=1 // pred_region
      _
    $region53: #{qnetwork_forward.1} parent=1 // pred_fallthru
      _
    %347 = vsyncpa [#allocation4], 1
    %348 = vsyncpa [#allocation6], 1

</llo_original>
